<compile_context>
chip_gen: v7x
topology: tpu7x:2x2x1
jax: 0.10.0
libtpu: 0.0.40
codegen_flags: <defaults>
</compile_context>

<pallas_src>
import functools

import jax
import jax.numpy as jnp
from jax import lax
from jax.experimental import pallas as pl
from jax.experimental.pallas import tpu as pltpu


# --------------------------------------------------------------------------- #
# Pallas kernel: NT-Xent loss (row-tiled, fused similarity matmul)             #
# --------------------------------------------------------------------------- #
def _ntxent_kernel(z_ref, logits_ref, loss_ref, *, temperature, batch, row_tile):
    B = batch
    twoB = 2 * B
    Tr = row_tile
    inv_t = jnp.float32(1.0 / temperature)

    row_start = pl.multiple_of(pl.program_id(0) * Tr, Tr)

    # ---- column side: full Z (2B, D), resident every grid step ------------- #
    zc = z_ref[...].astype(jnp.float32)
    cnorm = jnp.sqrt(jnp.sum(zc * zc, axis=1, keepdims=True))
    zc_n = (zc / jnp.maximum(cnorm, jnp.float32(1e-12))).astype(jnp.bfloat16)

    # ---- row side: this tile's rows (re-normalized; O(Tr*D), negligible) --- #
    zr = z_ref[pl.ds(row_start, Tr), :].astype(jnp.float32)
    rnorm = jnp.sqrt(jnp.sum(zr * zr, axis=1, keepdims=True))
    zr_n = (zr / jnp.maximum(rnorm, jnp.float32(1e-12))).astype(jnp.bfloat16)

    # ---- fused similarity block: one bf16 MXU matmul, f32 accumulation ----- #
    # contraction on the lane axis of both operands -> no transpose.
    s = lax.dot_general(
        zr_n, zc_n, (((1,), (1,)), ((), ())),
        preferred_element_type=jnp.float32) * inv_t              # (Tr, 2B)

    # torch.nan_to_num(logits, nan=0, posinf=0, neginf=0), applied once.
    s = jnp.where(jnp.isfinite(s), s, jnp.float32(0.0))

    # natural block order [[l00, l01], [l10, l11]]; wrapper reorders by slicing
    logits_ref[...] = s.astype(logits_ref.dtype)

    # ---- per-row cross entropy (reduction='none') --------------------------- #
    r = row_start + lax.broadcasted_iota(jnp.int32, (Tr, twoB), 0)  # global row
    c = lax.broadcasted_iota(jnp.int32, (Tr, twoB), 1)              # global col

    # Removing the l00/l11 diagonal (logits[~eye].view(B,-1)) is, for the CE,
    # equivalent to forcing exactly col==row to -inf before logsumexp.
    masked = jnp.where(c == r, jnp.float32(-1e30), s)
    m = jnp.max(masked, axis=1, keepdims=True)
    lse = jnp.log(jnp.sum(jnp.exp(masked - m), axis=1, keepdims=True)) + m

    # label i selects column i of the l01 / l10 block -> col == (row+B) mod 2B
    pos_col = jnp.where(r < B, r + B, r - B)
    pos = jnp.sum(jnp.where(c == pos_col, s, jnp.float32(0.0)),
                  axis=1, keepdims=True)

    loss_row = lse - pos

    # torch.nan_to_num(loss, 0.1): nan -> 0.1, +/-inf -> f32 max/min
    # (dead in practice since the logits were already made finite above).
    f32 = jnp.finfo(jnp.float32)
    loss_row = jnp.where(jnp.isnan(loss_row), jnp.float32(0.1), loss_row)
    loss_row = jnp.where(loss_row == jnp.inf, jnp.float32(f32.max), loss_row)
    loss_row = jnp.where(loss_row == -jnp.inf, jnp.float32(f32.min), loss_row)

    loss_ref[...] = loss_row


def _pick_row_tile(twoB, D, z_itemsize, budget_bytes=8 * 1024 * 1024):
    """Largest row tile whose working set fits the default scoped VMEM."""
    z_resident = 2 * twoB * D * z_itemsize            # double-buffered input
    for tr in (512, 256, 128, 64, 32, 16, 8):
        if twoB % tr:
            continue
        out_bytes = 2 * tr * twoB * 4                 # double-buffered out tile
        tmp_bytes = 4 * tr * twoB * 4                 # in-kernel f32 temporaries
        if z_resident + out_bytes + tmp_bytes <= budget_bytes:
            return tr
    return twoB                                       # monolithic fallback


def ntxent_pallas(z0, z1, *, temperature=0.5):
    B, D = z0.shape
    twoB = 2 * B
    z = jnp.concatenate([z0, z1], axis=0)             # (2B, D), caller dtype
    Tr = _pick_row_tile(twoB, D, z.dtype.itemsize)
    grid = (twoB // Tr,)

    kernel = functools.partial(
        _ntxent_kernel, temperature=float(temperature), batch=B, row_tile=Tr)

    logits, loss_rows = pl.pallas_call(
        kernel,
        out_shape=(jax.ShapeDtypeStruct((twoB, twoB), z.dtype),
                   jax.ShapeDtypeStruct((twoB, 1), jnp.float32)),
        grid=grid,
        in_specs=[pl.BlockSpec((twoB, D), lambda i: (0, 0))],
        out_specs=(pl.BlockSpec((Tr, twoB), lambda i: (i, 0)),
                   pl.BlockSpec((Tr, 1), lambda i: (i, 0))),
        compiler_params=pltpu.CompilerParams(
            dimension_semantics=("parallel",)),
    )(z)

    loss = jnp.sum(loss_rows) / jnp.float32(twoB)     # mean over 2B rows
    return loss, logits


# --------------------------------------------------------------------------- #
# Plain-JAX glue (track_lid, label/logit bookkeeping)                          #
# --------------------------------------------------------------------------- #
def lid_mle(data, reference, k):
    # TODO(synk): exact lid.lid_mle semantics unavailable; standard MLE LID
    # estimator with k clamped to N-1 (k=32/512 exceed the toy batch size).
    n = reference.shape[0]
    k = min(k, n - 1)
    d2 = (jnp.sum(data ** 2, 1, keepdims=True)
          - 2.0 * data @ reference.T
          + jnp.sum(reference ** 2, 1)[None, :])
    d = jnp.sqrt(jnp.maximum(d2, 0.0))
    d_sorted = jnp.sort(d, axis=1)[:, 1:k + 1]        # drop self-distance
    d_k = d_sorted[:, -1:]
    return -k / jnp.sum(jnp.log(d_sorted / (d_k + 1e-12) + 1e-12), axis=1)


def _drop_diag(x):
    """x[~eye].reshape(B, B-1) without a boolean-mask gather (static slices)."""
    B = x.shape[0]
    return x.reshape(-1)[1:].reshape(B - 1, B + 1)[:, :-1].reshape(B, B - 1)


def ntxent_forward(z0, z1, f0, f1, *, temperature=0.5):
    B = z0.shape[0]
    loss, S = ntxent_pallas(z0, z1, temperature=temperature)

    # natural block order -> [l01 | l00\diag ; l10 | l11\diag]
    l00 = S[:B, :B]
    l01 = S[:B, B:]
    l10 = S[B:, :B]
    l11 = S[B:, B:]
    logits = jnp.concatenate(
        [jnp.concatenate([l01, _drop_diag(l00)], axis=1),
         jnp.concatenate([l10, _drop_diag(l11)], axis=1)], axis=0)  # (2B, 2B-1)

    labels = jnp.tile(jnp.arange(B, dtype=jnp.int32), 2)            # rank == 0

    f = jnp.concatenate([f0, f1], axis=0)
    lids_k32 = lid_mle(f, f, 32)
    lids_k512 = lid_mle(f, f, 512)

    return {"loss": loss, "logits": logits, "labels": labels,
            "lids32": lids_k32, "lids512": lids_k512,
            "main_loss": float(loss)}


def _reference_loss(z0, z1, temperature):
    # Pure-JAX f32 reference for correctness checking.
    B = z0.shape[0]
    n0 = z0 / jnp.maximum(jnp.linalg.norm(z0, axis=1, keepdims=True), 1e-12)
    n1 = z1 / jnp.maximum(jnp.linalg.norm(z1, axis=1, keepdims=True), 1e-12)
    l00 = n0 @ n0.T / temperature
    l01 = n0 @ n1.T / temperature
    l10 = n1 @ n0.T / temperature
    l11 = n1 @ n1.T / temperature
    off = ~jnp.eye(B, dtype=bool)
    l00 = l00[off].reshape(B, B - 1)
    l11 = l11[off].reshape(B, B - 1)
    logits = jnp.concatenate(
        [jnp.concatenate([l01, l00], 1), jnp.concatenate([l10, l11], 1)], 0)
    logits = jnp.nan_to_num(logits, nan=0.0, posinf=0.0, neginf=0.0)
    labels = jnp.tile(jnp.arange(B), 2)
    lse = jax.scipy.special.logsumexp(logits, axis=1)
    ce = lse - logits[jnp.arange(2 * B), labels]
    ce = jnp.nan_to_num(ce, nan=0.1, posinf=0.1, neginf=0.1)
    return ce.mean()


# --------------------------------------------------------------------------- #
# Main                                                                         #
# --------------------------------------------------------------------------- #
if __name__ == "__main__":
    key = jax.random.PRNGKey(0)
    B, C, H, W = 8, 4, 16, 16          # NCHW images
    D_f, D_z = 64, 32                  # backbone feature / projection dims
    k_img, k_n0, k_n1, k_wf, k_wz = jax.random.split(key, 5)

    images = jax.random.normal(k_img, (B, C, H, W), jnp.float32)

    # TODO(synk): RandomResizedCrop / RandomHorizontalFlip / learned AugPolicy have
    # no clean Pallas equivalent; the two views are simulated with deterministic noise.
    x0 = images + 0.1 * jax.random.normal(k_n0, images.shape, jnp.float32)
    x1 = images + 0.1 * jax.random.normal(k_n1, images.shape, jnp.float32)

    # Deterministic stand-in for the external `model`: flatten -> ReLU-linear -> linear.
    Wf = 0.02 * jax.random.normal(k_wf, (C * H * W, D_f), jnp.float32)
    Wz = 0.10 * jax.random.normal(k_wz, (D_f, D_z), jnp.float32)

    def model(x):
        h = x.reshape(x.shape[0], -1)
        f = jnp.maximum(h @ Wf, 0.0)
        z = f @ Wz
        return f, z

    f0, z0 = model(x0)
    f1, z1 = model(x1)

    results = ntxent_forward(z0, z1, f0, f1, temperature=0.5)
    jax.block_until_ready(results["loss"])

    # bf16 MXU inputs -> compare against the f32 reference at bf16-appropriate tolerance.
    ref = _reference_loss(z0, z1, 0.5)
    assert jnp.allclose(results["loss"], ref, rtol=2e-2, atol=2e-2), (
        results["loss"], ref)
    assert results["logits"].shape == (2 * B, 2 * B - 1)
    assert bool(jnp.all(jnp.isfinite(results["logits"])))

    print("KERNEL_OK")
</pallas_src>

<mosaic_0001>
module attributes {stable_mosaic.version = 11 : i64} {
  func.func @_ntxent_kernel(%arg0: i32, %arg1: memref<16x32xf32, #tpu.memory_space<vmem>>, %arg2: memref<16x16xf32, #tpu.memory_space<vmem>>, %arg3: memref<16x1xf32, #tpu.memory_space<vmem>>) attributes {dimension_semantics = [#tpu.dimension_semantics<parallel>], iteration_bounds = array<i64: 1>, scalar_prefetch = 0 : i64, scratch_operands = 0 : i64, tpu.core_type = #tpu.core_type<tc>, window_params = [{pipeline_mode = #tpu.pipeline_mode<synchronous>, transform_indices = @transform_0, window_bounds = array<i64: 16, 32>}, {transform_indices = @transform_1, window_bounds = array<i64: 16, 16>}, {transform_indices = @transform_2, window_bounds = array<i64: 16, 1>}]} {
    %c16_i32 = arith.constant 16 : i32
    %0 = arith.muli %arg0, %c16_i32 : i32
    %1 = tpu.assume_multiple %0, 16 : i32
    %c0 = arith.constant 0 : index
    %c0_0 = arith.constant 0 : index
    %2 = vector.load %arg1[%c0, %c0_0] : memref<16x32xf32, #tpu.memory_space<vmem>>, vector<16x32xf32>
    %3 = arith.mulf %2, %2 : vector<16x32xf32>
    %cst = arith.constant dense<0.000000e+00> : vector<16xf32>
    %4 = vector.multi_reduction <add>, %3, %cst [1] : vector<16x32xf32> to vector<16xf32>
    %5 = vector.shape_cast %4 : vector<16xf32> to vector<16x1xf32>
    %6 = math.sqrt %5 : vector<16x1xf32>
    %cst_1 = arith.constant 9.99999996E-13 : f32
    %7 = vector.broadcast %cst_1 : f32 to vector<16x1xf32>
    %8 = arith.maximumf %6, %7 : vector<16x1xf32>
    %9 = vector.broadcast %8 : vector<16x1xf32> to vector<16x32xf32>
    %10 = arith.divf %2, %9 : vector<16x32xf32>
    %11 = arith.truncf %10 : vector<16x32xf32> to vector<16x32xbf16>
    %12 = arith.index_cast %1 : i32 to index
    %c0_2 = arith.constant 0 : index
    %13 = vector.load %arg1[%12, %c0_2] : memref<16x32xf32, #tpu.memory_space<vmem>>, vector<16x32xf32>
    %14 = arith.mulf %13, %13 : vector<16x32xf32>
    %cst_3 = arith.constant dense<0.000000e+00> : vector<16xf32>
    %15 = vector.multi_reduction <add>, %14, %cst_3 [1] : vector<16x32xf32> to vector<16xf32>
    %16 = vector.shape_cast %15 : vector<16xf32> to vector<16x1xf32>
    %17 = math.sqrt %16 : vector<16x1xf32>
    %cst_4 = arith.constant 9.99999996E-13 : f32
    %18 = vector.broadcast %cst_4 : f32 to vector<16x1xf32>
    %19 = arith.maximumf %17, %18 : vector<16x1xf32>
    %20 = vector.broadcast %19 : vector<16x1xf32> to vector<16x32xf32>
    %21 = arith.divf %13, %20 : vector<16x32xf32>
    %22 = arith.truncf %21 : vector<16x32xf32> to vector<16x32xbf16>
    %cst_5 = arith.constant dense<0.000000e+00> : vector<16x16xf32>
    %23 = tpu.matmul %22, %11, %cst_5 {dimension_numbers = #tpu.dot_dimension_numbers<[1], [1], [0], [0], [0, 0, 1, 0], [], []>} : vector<16x32xbf16>, vector<16x32xbf16>, vector<16x16xf32> -> vector<16x16xf32>
    %cst_6 = arith.constant 2.000000e+00 : f32
    %24 = vector.broadcast %cst_6 : f32 to vector<16x16xf32>
    %25 = arith.mulf %23, %24 : vector<16x16xf32>
    %26 = tpu.weird %25 : vector<16x16xf32> -> vector<16x16xi1>
    %cst_7 = arith.constant dense<true> : vector<16x16xi1>
    %27 = arith.xori %26, %cst_7 : vector<16x16xi1>
    %cst_8 = arith.constant 0.000000e+00 : f32
    %28 = vector.broadcast %cst_8 : f32 to vector<16x16xf32>
    %29 = arith.select %27, %25, %28 : vector<16x16xi1>, vector<16x16xf32>
    %c0_9 = arith.constant 0 : index
    %c0_10 = arith.constant 0 : index
    %30 = vector.load %arg2[%c0_9, %c0_10] : memref<16x16xf32, #tpu.memory_space<vmem>>, vector<16x16xf32>
    tpu.vector_store %arg2[%c0_9, %c0_10], %29 {strides = array<i32>} : memref<16x16xf32, #tpu.memory_space<vmem>>, vector<16x16xf32>,
    %31 = tpu.iota {dimensions = array<i32: 0>} : vector<16x16xi32>
    %32 = vector.broadcast %1 : i32 to vector<16x16xi32>
    %33 = arith.addi %32, %31 : vector<16x16xi32>
    %34 = tpu.iota {dimensions = array<i32: 1>} : vector<16x16xi32>
    %35 = arith.cmpi eq, %34, %33 : vector<16x16xi32>
    %cst_11 = arith.constant -1.000000e+30 : f32
    %36 = vector.broadcast %cst_11 : f32 to vector<16x16xf32>
    %37 = arith.select %35, %36, %29 : vector<16x16xi1>, vector<16x16xf32>
    %cst_12 = arith.constant dense<0xFF800000> : vector<16xf32>
    %38 = vector.multi_reduction <maximumf>, %37, %cst_12 [1] : vector<16x16xf32> to vector<16xf32>
    %39 = vector.shape_cast %38 : vector<16xf32> to vector<16x1xf32>
    %40 = vector.broadcast %39 : vector<16x1xf32> to vector<16x16xf32>
    %41 = arith.subf %37, %40 : vector<16x16xf32>
    %42 = math.exp %41 : vector<16x16xf32>
    %cst_13 = arith.constant dense<0.000000e+00> : vector<16xf32>
    %43 = vector.multi_reduction <add>, %42, %cst_13 [1] : vector<16x16xf32> to vector<16xf32>
    %44 = vector.shape_cast %43 : vector<16xf32> to vector<16x1xf32>
    %45 = math.log %44 : vector<16x1xf32>
    %46 = arith.addf %45, %39 : vector<16x1xf32>
    %c8_i32 = arith.constant 8 : i32
    %47 = vector.broadcast %c8_i32 : i32 to vector<16x16xi32>
    %48 = arith.cmpi slt, %33, %47 : vector<16x16xi32>
    %c8_i32_14 = arith.constant 8 : i32
    %49 = vector.broadcast %c8_i32_14 : i32 to vector<16x16xi32>
    %50 = arith.addi %33, %49 : vector<16x16xi32>
    %c8_i32_15 = arith.constant 8 : i32
    %51 = vector.broadcast %c8_i32_15 : i32 to vector<16x16xi32>
    %52 = arith.subi %33, %51 : vector<16x16xi32>
    %53 = arith.select %48, %50, %52 : vector<16x16xi1>, vector<16x16xi32>
    %54 = arith.cmpi eq, %34, %53 : vector<16x16xi32>
    %cst_16 = arith.constant 0.000000e+00 : f32
    %55 = vector.broadcast %cst_16 : f32 to vector<16x16xf32>
    %56 = arith.select %54, %29, %55 : vector<16x16xi1>, vector<16x16xf32>
    %cst_17 = arith.constant dense<0.000000e+00> : vector<16xf32>
    %57 = vector.multi_reduction <add>, %56, %cst_17 [1] : vector<16x16xf32> to vector<16xf32>
    %58 = vector.shape_cast %57 : vector<16xf32> to vector<16x1xf32>
    %59 = arith.subf %46, %58 : vector<16x1xf32>
    %60 = arith.cmpf one, %59, %59 : vector<16x1xf32>
    %cst_18 = arith.constant 1.000000e-01 : f32
    %61 = vector.broadcast %cst_18 : f32 to vector<16x1xf32>
    %62 = arith.select %60, %61, %59 : vector<16x1xi1>, vector<16x1xf32>
    %cst_19 = arith.constant 0x7F800000 : f32
    %63 = vector.broadcast %cst_19 : f32 to vector<16x1xf32>
    %64 = arith.cmpf oeq, %62, %63 : vector<16x1xf32>
    %cst_20 = arith.constant 3.40282347E+38 : f32
    %65 = vector.broadcast %cst_20 : f32 to vector<16x1xf32>
    %66 = arith.select %64, %65, %62 : vector<16x1xi1>, vector<16x1xf32>
    %cst_21 = arith.constant 0xFF800000 : f32
    %67 = vector.broadcast %cst_21 : f32 to vector<16x1xf32>
    %68 = arith.cmpf oeq, %66, %67 : vector<16x1xf32>
    %cst_22 = arith.constant -3.40282347E+38 : f32
    %69 = vector.broadcast %cst_22 : f32 to vector<16x1xf32>
    %70 = arith.select %68, %69, %66 : vector<16x1xi1>, vector<16x1xf32>
    %c0_23 = arith.constant 0 : index
    %c0_24 = arith.constant 0 : index
    %71 = vector.load %arg3[%c0_23, %c0_24] : memref<16x1xf32, #tpu.memory_space<vmem>>, vector<16x1xf32>
    tpu.vector_store %arg3[%c0_23, %c0_24], %70 {strides = array<i32>} : memref<16x1xf32, #tpu.memory_space<vmem>>, vector<16x1xf32>,
    return
  }
  func.func @transform_0(%arg0: i32) -> (i32, i32) {
    %c0_i32 = arith.constant 0 : i32
    %c0_i32_0 = arith.constant 0 : i32
    %c0_i32_1 = arith.constant 0 : i32
    return %c0_i32, %c0_i32_0 : i32, i32
  }
  func.func @transform_1(%arg0: i32) -> (i32, i32) {
    %c0_i32 = arith.constant 0 : i32
    %c0_i32_0 = arith.constant 0 : i32
    return %arg0, %c0_i32 : i32, i32
  }
  func.func @transform_2(%arg0: i32) -> (i32, i32) {
    %c0_i32 = arith.constant 0 : i32
    %c0_i32_0 = arith.constant 0 : i32
    return %arg0, %c0_i32 : i32, i32
  }
}

</mosaic_0001>

<llo_original>
// kernel: tpu_custom_call.1
$region0: #{tpu_custom_call.1}
  #allocation0 [shape = 'u32[]', space=smem, size = 0x4, offset = 0x4, fixed_abs, tag = 'smem constant byte address 0x4 - core index']
  #allocation1 [shape = 'u32[144,128]{1,0:T(1,128)}', space=vmem, size = 0x12000, scoped, tag = 'internal scratch']
  %s0 = inlined_call_operand.hbm [shape: f32[16,32], index: 0, kind: input, shape index: {}]
  %s1 = inlined_call_operand.hbm [shape: f32[16,16], index: 1, kind: output, shape index: {0}]
  %s2 = inlined_call_operand.vmem [shape: f32[16,1], index: 2, kind: output, shape index: {1}]
  %3 = xla_tuple %s1, %s2
  %s4 = sld [smem:[#allocation0]]
  $region26: #{tpu_custom_call.1} parent=0
    _
  %s6 = ssub.s32 1, %s4
  %s7 = scalar_select 0, %s6, %s4
  $region1: #{tpu_custom_call.1} parent=0
    #allocation2 [shape = 'u8[8192]{0}', space=vmem, size = 0x2000, scoped, tag = 'input window, operand 0, single buffered']
    #allocation3 [shape = 's32[1]{0}', space=sflag, size = 0x4, scoped, tag = 'scoped memory for tpu_custom_call.1']
    #allocation4 [shape = 's32[1]{0}', space=sflag, size = 0x4, scoped, tag = 'scoped memory for tpu_custom_call.1']
    #allocation5 [shape = 'u8[8192]{0}', space=vmem, size = 0x2000, scoped, tag = 'output window, operand 0, single buffered']
    %8 = vsyncpa [#allocation3], 0
    %9 = vsyncpa [#allocation4], 0
    // Predicated region
    $region2: #{tpu_custom_call.1} parent=1 // pred_check
      _
    $region3: #{tpu_custom_call.1} parent=1 // pred_check_branch
      %11 = sbr.rel (0) target = $region5
    $region4: #{tpu_custom_call.1} parent=1 // pred_region
      %s13 = ssub.s32 256, 256
      %14 = vsyncadd [#allocation3], %s13
      %s15 = sshll.u32 [#allocation2], 4
      %s16 = int_to_ptr.vmem [resolvable:$true] %s15
      %21 = dma.hbm_to_vmem [thread:$0]  %s0, 256, %s16, [#allocation3], 128, 128, 8
    $region5: #{tpu_custom_call.1} parent=1 // pred_fallthru
      _
    // Predicated region
    $region6: #{tpu_custom_call.1} parent=1 // pred_check
      _
    $region7: #{tpu_custom_call.1} parent=1 // pred_check_branch
      %23 = sbr.rel (0) target = $region9
    $region8: #{tpu_custom_call.1} parent=1 // pred_region
      %24 = dma.done [#allocation3], 256
    $region9: #{tpu_custom_call.1} parent=1 // pred_fallthru
      _
    %s26 = smul.u32 0, 16
    %v27 = vld [vmem:[#allocation2] sm:$0xff]
    %v28 = vld [vmem:[#allocation2 + $0x8] sm:$0xff]
    %v29 = vmul.f32 %v27, %v27
    %v30 = vmul.f32 %v28, %v28
    %vm31 = vcmask 261120
    %v32 = vsel %vm31, %v29, 0.0
    %33 = vadd.xlane.f32.xlu0 %v32
    %v34 = vpop.xlane.xlu0 %33
    %v35 = vsel %vm31, %v30, 0.0
    %36 = vadd.xlane.f32.xlu0 %v35
    %v37 = vpop.xlane.xlu0 %36
    %v38 = vrsqrt.pop %v34
    %v39 = vmul.f32 %v34, %v38
    %vm40 = vcmp.eq.f32.partialorder %v34, inf
    %v41 = vsel %vm40, %v34, %v39
    %vm42 = vcmp.eq.f32.partialorder %v34, 0.0
    %v43 = vand.u32 %v34, 2147483648
    %v44 = vsel %vm42, %v43, %v41
    %v45 = vrsqrt.pop %v37
    %v46 = vmul.f32 %v37, %v45
    %vm47 = vcmp.eq.f32.partialorder %v37, inf
    %v48 = vsel %vm47, %v37, %v46
    %vm49 = vcmp.eq.f32.partialorder %v37, 0.0
    %v50 = vand.u32 %v37, 2147483648
    %v51 = vsel %vm49, %v50, %v48
    %v52 = vmax.f32 %v44, 1e-12
    %v53 = vmax.f32 %v51, 1e-12
    %v54 = vrcp.pop %v52
    %v55 = vmul.f32 %v27, %v54
    %v56 = vrcp.pop %v53
    %v57 = vmul.f32 %v28, %v56
    %v58 = vpack.c.bf16 %v57, %v55
    %s59 = scalar_lea.vmem [#allocation2], %s26
    %v60 = vld [vmem:[%s59] sm:$0xff]
    %v61 = vld [vmem:[%s59 + $0x8] sm:$0xff]
    %v62 = vmul.f32 %v60, %v60
    %v63 = vmul.f32 %v61, %v61
    %v64 = vsel %vm31, %v62, 0.0
    %65 = vadd.xlane.f32.xlu0 %v64
    %v66 = vpop.xlane.xlu0 %65
    %v67 = vsel %vm31, %v63, 0.0
    %68 = vadd.xlane.f32.xlu0 %v67
    %v69 = vpop.xlane.xlu0 %68
    %v70 = vrsqrt.pop %v66
    %v71 = vmul.f32 %v66, %v70
    %vm72 = vcmp.eq.f32.partialorder %v66, inf
    %v73 = vsel %vm72, %v66, %v71
    %vm74 = vcmp.eq.f32.partialorder %v66, 0.0
    %v75 = vand.u32 %v66, 2147483648
    %v76 = vsel %vm74, %v75, %v73
    %v77 = vrsqrt.pop %v69
    %v78 = vmul.f32 %v69, %v77
    %vm79 = vcmp.eq.f32.partialorder %v69, inf
    %v80 = vsel %vm79, %v69, %v78
    %vm81 = vcmp.eq.f32.partialorder %v69, 0.0
    %v82 = vand.u32 %v69, 2147483648
    %v83 = vsel %vm81, %v82, %v80
    %v84 = vmax.f32 %v76, 1e-12
    %v85 = vmax.f32 %v83, 1e-12
    %v86 = vrcp.pop %v84
    %v87 = vmul.f32 %v60, %v86
    %v88 = vrcp.pop %v85
    %v89 = vmul.f32 %v61, %v88
    %v90 = vpack.c.bf16 %v89, %v87
    %v92 = vsel %vm31, %v90, 0
    %v95 = vsel %vm31, %v58, 0
    %97 = vmatprep.subr.bf16.mxu0 0
    %98 = vmatpush1.bf16.xpose.msra.mxu0 %v95
    %99 = vmatprep.subr.bf16.mxu0 0
    %100 = vmatpush1.bf16.xpose.msra.mxu0 0
    %101 = vmatprep.subr.bf16.mxu0 0
    %102 = vmatpush1.bf16.xpose.msra.mxu0 0
    %103 = vmatprep.subr.bf16.mxu0 0
    %104 = vmatpush1.bf16.xpose.msra.mxu0 0
    %105 = vmatprep.subr.bf16.mxu0 0
    %106 = vmatpush1.bf16.xpose.msra.mxu0 0
    %107 = vmatprep.subr.bf16.mxu0 0
    %108 = vmatpush1.bf16.xpose.msra.mxu0 0
    %109 = vmatprep.subr.bf16.mxu0 0
    %110 = vmatpush1.bf16.xpose.msra.mxu0 0
    %111 = vmatprep.subr.bf16.mxu0 0
    %112 = vmatpush1.bf16.xpose.msra.mxu0 0
    %113 = vmatprep.subr.bf16.mxu0 0
    %114 = vmatpush1.bf16.xpose.msra.mxu0 0
    %115 = vmatprep.subr.bf16.mxu0 0
    %116 = vmatpush1.bf16.xpose.msra.mxu0 0
    %117 = vmatprep.subr.bf16.mxu0 0
    %118 = vmatpush1.bf16.xpose.msra.mxu0 0
    %119 = vmatprep.subr.bf16.mxu0 0
    %120 = vmatpush1.bf16.xpose.msra.mxu0 0
    %121 = vmatprep.subr.bf16.mxu0 0
    %122 = vmatpush1.bf16.xpose.msra.mxu0 0
    %123 = vmatprep.subr.bf16.mxu0 0
    %124 = vmatpush1.bf16.xpose.msra.mxu0 0
    %125 = vmatprep.subr.bf16.mxu0 0
    %126 = vmatpush1.bf16.xpose.msra.mxu0 0
    %127 = vmatprep.subr.bf16.mxu0 0
    %128 = vmatpush1.bf16.xpose.msra.mxu0 0
    %129 = vmatprep.mubr.bf16.mxu0 0
    %130 = vmatmul.mubr.bf16.gmra.mrb[0].mxu0 %v92
    %v131 = vpop.f32.mrb[0].mxu0
    %v132 = vadd.f32 0.0, %v131
    %v133 = vpop.f32.mrb[0].mxu0
    %v134 = vpop.f32.mrb[0].mxu0
    %v135 = vadd.f32 0.0, %v134
    %v136 = vpop.f32.mrb[0].mxu0
    %137 = vdwg.mxu0
    %v138 = vmul.f32 %v132, 2.0
    %v139 = vmul.f32 %v135, 2.0
    %vm140 = vweird.f32 %v138
    %vm141 = vweird.f32 %v139
    %vm142 = vmxor %vm140, 1
    %vm143 = vmxor %vm141, 1
    %v144 = vsel %vm142, %v138, 0.0
    %v145 = vsel %vm143, %v139, 0.0
    %vm146 = vcmask 130048
    %147 = vst.msk [vmem:[#allocation5] sm:$0xff] %vm146, %v144
    %148 = vst.msk [vmem:[#allocation5 + $0x8] sm:$0xff] %vm146, %v145
    %v149 = vlaneseq
    %v150 = vshrl.u32 %v149, 7
    %v151 = vadd.s32 %v150, 8
    %v152 = vstv %s26
    %v153 = vadd.s32 %v152, %v150
    %v154 = vadd.s32 %v152, %v151
    %v155 = vlaneseq
    %v156 = vand.u32 %v155, 127
    %vm157 = vcmp.eq.s32.totalorder %v156, %v153
    %vm158 = vcmp.eq.s32.totalorder %v156, %v154
    %v159 = vsel %vm157, -1e+30, %v144
    %v160 = vsel %vm158, -1e+30, %v145
    %v161 = vsel %vm146, %v159, -inf
    %162 = vmax.xlane.f32.xlu0 %v161
    %v163 = vpop.xlane.xlu0 %162
    %v164 = vsel %vm146, %v160, -inf
    %165 = vmax.xlane.f32.xlu0 %v164
    %v166 = vpop.xlane.xlu0 %165
    %v167 = vsub.f32 %v159, %v163
    %v168 = vsub.f32 %v160, %v166
    %v169 = vmul.f32 %v167, 1.442695
    %v170 = vpow.pop %v169
    %v171 = vmul.f32 %v168, 1.442695
    %v172 = vpow.pop %v171
    %v173 = vsel %vm146, %v170, 0.0
    %174 = vadd.xlane.f32.xlu0 %v173
    %v175 = vpop.xlane.xlu0 %174
    %v176 = vsel %vm146, %v172, 0.0
    %177 = vadd.xlane.f32.xlu0 %v176
    %v178 = vpop.xlane.xlu0 %177
    %v179 = vlog2.pop %v175
    %v180 = vmul.f32 %v179, 0.6931472
    %v181 = vlog2.pop %v178
    %v182 = vmul.f32 %v181, 0.6931472
    %v183 = vadd.f32 %v180, %v163
    %v184 = vadd.f32 %v182, %v166
    %vm185 = vcmp.lt.s32.totalorder %v153, 8
    %vm186 = vcmp.lt.s32.totalorder %v154, 8
    %v187 = vadd.s32 %v153, 8
    %v188 = vadd.s32 %v154, 8
    %v189 = vsub.s32 %v153, 8
    %v190 = vsub.s32 %v154, 8
    %v191 = vsel %vm185, %v187, %v189
    %v192 = vsel %vm186, %v188, %v190
    %vm193 = vcmp.eq.s32.totalorder %v156, %v191
    %vm194 = vcmp.eq.s32.totalorder %v156, %v192
    %v195 = vsel %vm193, %v144, 0.0
    %v196 = vsel %vm194, %v145, 0.0
    %v197 = vsel %vm146, %v195, 0.0
    %198 = vadd.xlane.f32.xlu0 %v197
    %v199 = vpop.xlane.xlu0 %198
    %v200 = vsel %vm146, %v196, 0.0
    %201 = vadd.xlane.f32.xlu0 %v200
    %v202 = vpop.xlane.xlu0 %201
    %v203 = vsub.f32 %v183, %v199
    %v204 = vsub.f32 %v184, %v202
    %vm205 = vcmp.ne.f32.partialorder %v203, %v203
    %vm206 = vcmp.ne.f32.partialorder %v204, %v204
    %v207 = vsel %vm205, 0.1, %v203
    %v208 = vsel %vm206, 0.1, %v204
    %vm209 = vcmp.eq.f32.partialorder %v207, inf
    %vm210 = vcmp.eq.f32.partialorder %v208, inf
    %v211 = vsel %vm209, 3.4028235e+38, %v207
    %v212 = vsel %vm210, 3.4028235e+38, %v208
    %vm213 = vcmp.eq.f32.partialorder %v211, -inf
    %vm214 = vcmp.eq.f32.partialorder %v212, -inf
    %v215 = vsel %vm213, -3.4028235e+38, %v211
    %v216 = vsel %vm214, -3.4028235e+38, %v212
    %vm217 = vcmask 7168
    %218 = vst.msk [vmem:[%s2] sm:$0xff] %vm217, %v215
    %219 = vst.msk [vmem:[%s2 + $0x8] sm:$0xff] %vm217, %v216
    // Predicated region
    $region10: #{tpu_custom_call.1} parent=1 // pred_check
      _
    $region11: #{tpu_custom_call.1} parent=1 // pred_check_branch
      %221 = sbr.rel (0) target = $region13
    $region12: #{tpu_custom_call.1} parent=1 // pred_region
      %s223 = ssub.s32 256, 256
      %224 = vsyncadd [#allocation4], %s223
      %s225 = sshll.u32 [#allocation5], 4
      %s226 = int_to_ptr.vmem [resolvable:$true] %s225
      %231 = dma.vmem_to_hbm [thread:$0]  %s226, 256, %s1, [#allocation4], 128, 128, 8
    $region13: #{tpu_custom_call.1} parent=1 // pred_fallthru
      _
    // Predicated region
    $region14: #{tpu_custom_call.1} parent=1 // pred_check
      _
    $region15: #{tpu_custom_call.1} parent=1 // pred_check_branch
      %233 = sbr.rel (0) target = $region17
    $region16: #{tpu_custom_call.1} parent=1 // pred_region
      _
    $region17: #{tpu_custom_call.1} parent=1 // pred_fallthru
      _
    // Predicated region
    $region18: #{tpu_custom_call.1} parent=1 // pred_check
      _
    $region19: #{tpu_custom_call.1} parent=1 // pred_check_branch
      %235 = sbr.rel (0) target = $region21
    $region20: #{tpu_custom_call.1} parent=1 // pred_region
      %236 = dma.done [#allocation4], 256
    $region21: #{tpu_custom_call.1} parent=1 // pred_fallthru
      _
    // Predicated region
    $region22: #{tpu_custom_call.1} parent=1 // pred_check
      _
    $region23: #{tpu_custom_call.1} parent=1 // pred_check_branch
      %238 = sbr.rel (0) target = $region25
    $region24: #{tpu_custom_call.1} parent=1 // pred_region
      _
    $region25: #{tpu_custom_call.1} parent=1 // pred_fallthru
      _
    %239 = vsyncpa [#allocation3], 1
    %240 = vsyncpa [#allocation4], 1

</llo_original>
